<compile_context>
chip_gen: v7x
topology: tpu7x:2x2x1
jax: 0.10.0
libtpu: 0.0.40
codegen_flags: <defaults>
</compile_context>

<pallas_src>
import functools

import jax
import jax.numpy as jnp
from jax.experimental import pallas as pl
from jax.experimental.pallas import tpu as pltpu


_LANE_CANDIDATES = (512, 256, 128)  # lane-dense slab widths (multiples of 128)
_MIN_PALLAS_ELEMS = 1024            # below this, plain fused XLA wins outright
# TODO(synk): in production raise _MIN_PALLAS_ELEMS to ~256K elements; kept
# small here so the demo below actually exercises the Pallas path.


def _lambda_kernel(x_ref, o_ref, *, compute_dtype):
    # elementwise: x * sigmoid(x); downcast only on the store.
    x = x_ref[...].astype(compute_dtype)
    o_ref[...] = (x * jax.nn.sigmoid(x)).astype(o_ref.dtype)


def _sublane_multiple(dtype) -> int:
    # f32 -> 8, bf16/f16 -> 16, int8/fp8 -> 32
    return max(8, 32 // jnp.dtype(dtype).itemsize)


def _round_up(x: int, m: int) -> int:
    return ((x + m - 1) // m) * m


@functools.lru_cache(maxsize=1)
def _device_kind() -> str:
    try:
        return jax.devices()[0].device_kind.lower()
    except Exception:  # pragma: no cover - defensive; never expected on TPU
        return ""


def _tile_target_bytes() -> int:
    # v5e: default scoped VMEM is 16 MiB -> 2 MiB tiles (4 live buffers = 8 MiB).
    # v6e / v7x: 4 MiB tiles (16 MiB live) fit the 32 MiB default scoped VMEM
    # and amortize per-grid-step overhead better at higher HBM bandwidth.
    return (2 << 20) if "v5" in _device_kind() else (4 << 20)


def _lambda_pallas(x2d: jax.Array, tile_r: int, compute_dtype) -> jax.Array:
    rows, lanes = x2d.shape
    grid = (pl.cdiv(rows, tile_r),)
    return pl.pallas_call(
        functools.partial(_lambda_kernel, compute_dtype=compute_dtype),
        out_shape=jax.ShapeDtypeStruct((rows, lanes), x2d.dtype),
        grid_spec=pl.GridSpec(
            grid=grid,
            in_specs=[pl.BlockSpec((tile_r, lanes), lambda i: (i, 0))],
            out_specs=pl.BlockSpec((tile_r, lanes), lambda i: (i, 0)),
        ),
        compiler_params=pltpu.CompilerParams(
            dimension_semantics=("parallel",),  # 2 TCs on v7x; no-op on v5e/v6e
        ),
    )(x2d)


@jax.jit
def lambda_forward(x: jax.Array) -> jax.Array:
    """Pallas implementation of Lambda(lambda x: x * sigmoid(x)).forward(x)."""
    orig_shape = x.shape
    total = x.size
    dtype = x.dtype

    # Largest 128-multiple lane width that exactly divides the element count.
    lanes = next((l for l in _LANE_CANDIDATES if total % l == 0), None)
    if lanes is None or total < _MIN_PALLAS_ELEMS:
        # Misaligned tail or tiny tensor: fused XLA elementwise is strictly
        # better than any pad/slice + pallas_call fixed cost.
        return x * jax.nn.sigmoid(x)

    rows = total // lanes
    sub = _sublane_multiple(dtype)
    itemsize = jnp.dtype(dtype).itemsize
    max_tile_rows = max(
        sub, (_tile_target_bytes() // (lanes * itemsize)) // sub * sub
    )

    if rows <= 2 * sub:
        # Single full-extent block (block dim == array dim is always legal).
        tile_r = rows
    else:
        # >= 2 balanced sublane-aligned tiles: v7x megacore + pipelining.
        n_tiles = max(2, pl.cdiv(rows, max_tile_rows))
        tile_r = min(rows, _round_up(pl.cdiv(rows, n_tiles), sub))

    # bf16 native compute on v6e/v7x; f32 everywhere else (and for f32 input).
    if dtype == jnp.bfloat16 and "v5" not in _device_kind():
        compute_dtype = jnp.bfloat16
    else:
        compute_dtype = jnp.float32

    x2d = x.reshape(rows, lanes)           # reshape view, no HBM copy
    out2d = _lambda_pallas(x2d, tile_r, compute_dtype)
    return out2d.reshape(orig_shape)


def lambda_forward_ref(x: jax.Array) -> jax.Array:
    # pure-JAX reference for the same lambda
    return x * jax.nn.sigmoid(x)


if __name__ == "__main__":
    key = jax.random.PRNGKey(0)
    # small NCHW input: batch=2, channels=4, spatial=16x16
    x = jax.random.normal(key, (2, 4, 16, 16), dtype=jnp.float32)

    out = lambda_forward(x)
    out = jax.block_until_ready(out)

    ref = lambda_forward_ref(x)
    assert out.shape == ref.shape and out.dtype == ref.dtype
    assert jnp.allclose(out, ref, atol=1e-6, rtol=1e-6)

    print("KERNEL_OK")
</pallas_src>

<mosaic_0001>
module attributes {stable_mosaic.version = 11 : i64} {
  func.func @_lambda_kernel(%arg0: i32, %arg1: memref<4x512xf32, #tpu.memory_space<vmem>>, %arg2: memref<4x512xf32, #tpu.memory_space<vmem>>) attributes {dimension_semantics = [#tpu.dimension_semantics<parallel>], iteration_bounds = array<i64: 1>, scalar_prefetch = 0 : i64, scratch_operands = 0 : i64, tpu.core_type = #tpu.core_type<tc>, window_params = [{transform_indices = @transform_0, window_bounds = array<i64: 4, 512>}, {transform_indices = @transform_1, window_bounds = array<i64: 4, 512>}]} {
    %c0 = arith.constant 0 : index
    %c0_0 = arith.constant 0 : index
    %0 = vector.load %arg1[%c0, %c0_0] : memref<4x512xf32, #tpu.memory_space<vmem>>, vector<4x512xf32>
    %1 = arith.negf %0 : vector<4x512xf32>
    %2 = math.exp %1 : vector<4x512xf32>
    %cst = arith.constant 1.000000e+00 : f32
    %3 = vector.broadcast %cst : f32 to vector<4x512xf32>
    %4 = arith.addf %3, %2 : vector<4x512xf32>
    %5 = arith.divf %3, %4 : vector<4x512xf32>
    %6 = arith.mulf %0, %5 : vector<4x512xf32>
    %c0_1 = arith.constant 0 : index
    %c0_2 = arith.constant 0 : index
    %7 = vector.load %arg2[%c0_1, %c0_2] : memref<4x512xf32, #tpu.memory_space<vmem>>, vector<4x512xf32>
    tpu.vector_store %arg2[%c0_1, %c0_2], %6 {strides = array<i32>} : memref<4x512xf32, #tpu.memory_space<vmem>>, vector<4x512xf32>,
    return
  }
  func.func @transform_0(%arg0: i32) -> (i32, i32) {
    %c0_i32 = arith.constant 0 : i32
    %c0_i32_0 = arith.constant 0 : i32
    return %arg0, %c0_i32 : i32, i32
  }
  func.func @transform_1(%arg0: i32) -> (i32, i32) {
    %c0_i32 = arith.constant 0 : i32
    %c0_i32_0 = arith.constant 0 : i32
    return %arg0, %c0_i32 : i32, i32
  }
}

</mosaic_0001>

<llo_original>
// kernel: lambda_forward.1
$region0: #{lambda_forward.1}
  #allocation0 [shape = 'u32[]', space=smem, size = 0x4, offset = 0x4, fixed_abs, tag = 'smem constant byte address 0x4 - core index']
  #allocation1 [shape = 'u32[144,128]{1,0:T(1,128)}', space=vmem, size = 0x12000, scoped, tag = 'internal scratch']
  %s0 = inlined_call_operand.vmem [shape: f32[4,512], index: 0, kind: input, shape index: {}]
  %s1 = inlined_call_operand.vmem [shape: f32[4,512], index: 1, kind: output, shape index: {}]
  %s2 = sld [smem:[#allocation0]]
  $region14: #{lambda_forward.1} parent=0
    _
  %s4 = ssub.s32 1, %s2
  %s5 = scalar_select 0, %s4, %s2
  // Predicated region
  $region2: #{lambda_forward.1} parent=0 // pred_check
    _
  $region3: #{lambda_forward.1} parent=0 // pred_check_branch
    %7 = sbr.rel (0) target = $region5
  $region4: #{lambda_forward.1} parent=0 // pred_region
    _
  $region5: #{lambda_forward.1} parent=0 // pred_fallthru
    _
  %v8 = vld [vmem:[%s0] sm:$0xff]
  %v9 = vld [vmem:[%s0 + $0x8] sm:$0xff]
  %v10 = vxor.u32 %v8, 2147483648
  %v11 = vxor.u32 %v9, 2147483648
  %v12 = vmul.f32 %v10, 1.442695
  %v13 = vpow.pop %v12
  %v14 = vmul.f32 %v11, 1.442695
  %v15 = vpow.pop %v14
  %v16 = vadd.f32 %v13, 1.0
  %v17 = vadd.f32 %v15, 1.0
  %v18 = vrcp.pop %v16
  %v19 = vmul.f32 1.0, %v18
  %v20 = vrcp.pop %v17
  %v21 = vmul.f32 1.0, %v20
  %v22 = vmul.f32 %v8, %v19
  %v23 = vmul.f32 %v9, %v21
  %24 = vst [vmem:[%s1] sm:$0xff] %v22
  %25 = vst [vmem:[%s1 + $0x8] sm:$0xff] %v23
  // Predicated region
  $region6: #{lambda_forward.1} parent=0 // pred_check
    _
  $region7: #{lambda_forward.1} parent=0 // pred_check_branch
    %27 = sbr.rel (0) target = $region9
  $region8: #{lambda_forward.1} parent=0 // pred_region
    _
  $region9: #{lambda_forward.1} parent=0 // pred_fallthru
    _
  // Predicated region
  $region10: #{lambda_forward.1} parent=0 // pred_check
    _
  $region11: #{lambda_forward.1} parent=0 // pred_check_branch
    %29 = sbr.rel (0) target = $region13
  $region12: #{lambda_forward.1} parent=0 // pred_region
    _
  $region13: #{lambda_forward.1} parent=0 // pred_fallthru
    _

</llo_original>
